<compile_context>
chip_gen: v6e
topology: v6e:2x2x1
jax: 0.10.0
libtpu: 0.0.40
codegen_flags: <defaults>
</compile_context>

<pallas_src>
import functools

import jax
import jax.numpy as jnp
from jax.experimental import pallas as pl
from jax.experimental.pallas import tpu as pltpu

LANES = 128
MAX_TILE_ROWS = 2048  # 2048 * 128 * 4 B = 1 MiB per f32 input block


def _smooth_peak_loss_kernel(peak_ref, x_ref, t_ref, out_ref, acc_ref, *,
                             weight, n):
    i = pl.program_id(0)

    @pl.when(i == 0)
    def _():
        acc_ref[...] = jnp.zeros_like(acc_ref)

    x = x_ref[...]                      # (tile_rows, 128) f32 in VMEM
    t = t_ref[...]                      # (tile_rows, 128) f32 in VMEM
    last_peak = peak_ref[0]             # scalar read from SMEM (peaks[-1])

    d = x - t
    diff2 = d * d
    coef = jnp.where(t == last_peak, jnp.float32(1.0), jnp.float32(weight))
    acc_ref[...] += jnp.sum(coef * diff2)   # per-tile partial sum (XLU reduce)

    @pl.when(i == pl.num_programs(0) - 1)
    def _():
        out_ref[...] = acc_ref[...] / jnp.float32(n)


def smooth_peak_loss(input_, target, peaks, weight):
    """loss = mean_i [ (1 if target[i]==peaks[-1] else weight) * (x_i-t_i)^2 ]."""
    n = int(input_.shape[0])
    x = jnp.asarray(input_, jnp.float32).reshape(-1)
    t = jnp.asarray(target, jnp.float32).reshape(-1)
    # Only the LAST peak matters (mirrors the PyTorch checkValue loop).
    last_peak = jnp.asarray(peaks, jnp.float32).reshape(-1)[-1:]  # shape (1,)

    # Lane/sublane-dense 2-D layout: (rows, 128), rows a multiple of 8.
    rows = -(-n // LANES)
    rows = max(rows, 8)
    rows = ((rows + 7) // 8) * 8
    tile_rows = min(MAX_TILE_ROWS, rows)
    num_tiles = -(-rows // tile_rows)
    rows_padded = num_tiles * tile_rows
    padded_len = rows_padded * LANES
    pad = padded_len - n

    # Pad with input = target = 0 -> diff^2 = 0, zero contribution always.
    x2 = jnp.pad(x, (0, pad)).reshape(rows_padded, LANES)
    t2 = jnp.pad(t, (0, pad)).reshape(rows_padded, LANES)

    out = pl.pallas_call(
        functools.partial(
            _smooth_peak_loss_kernel, weight=float(weight), n=n),
        out_shape=jax.ShapeDtypeStruct((1, 1), jnp.float32),
        grid=(num_tiles,),
        in_specs=[
            pl.BlockSpec(memory_space=pltpu.MemorySpace.SMEM),        # peaks[-1]
            pl.BlockSpec((tile_rows, LANES), lambda i: (i, 0)),       # input
            pl.BlockSpec((tile_rows, LANES), lambda i: (i, 0)),       # target
        ],
        out_specs=pl.BlockSpec((1, 1), lambda i: (0, 0)),
        scratch_shapes=[pltpu.VMEM((1, 1), jnp.float32)],
        compiler_params=pltpu.CompilerParams(
            dimension_semantics=("arbitrary",)),
    )(last_peak, x2, t2)
    return out[0, 0]


def _ref_loss(inp, target, peaks, weight):
    coef = jnp.where(target == peaks[-1], jnp.float32(1.0), jnp.float32(weight))
    return jnp.sum(coef * (inp - target) ** 2) / inp.shape[0]


if __name__ == "__main__":
    key = jax.random.PRNGKey(0)
    weight = 0.5
    peaks = jnp.array([1.0, 2.0, 3.0, 4.0], dtype=jnp.float32)

    # Case 1: small shape consistent with the module (n = 16), single tile.
    k1, k2, k3, k4 = jax.random.split(key, 4)
    n_small = 16
    target_s = jax.random.choice(k1, peaks, shape=(n_small,))
    inp_s = (jax.random.normal(k2, (n_small,), dtype=jnp.float32)
             + target_s).astype(jnp.float32)
    loss_s = jax.block_until_ready(
        smooth_peak_loss(inp_s, target_s, peaks, weight))
    ref_s = _ref_loss(inp_s, target_s, peaks, weight)
    assert jnp.allclose(loss_s, ref_s, rtol=1e-5, atol=1e-6), (loss_s, ref_s)

    # Case 2: larger odd N to exercise the multi-tile grid + padded tail.
    n_big = 300_001
    target_b = jax.random.choice(k3, peaks, shape=(n_big,))
    inp_b = (jax.random.normal(k4, (n_big,), dtype=jnp.float32)
             + target_b).astype(jnp.float32)
    loss_b = jax.block_until_ready(
        smooth_peak_loss(inp_b, target_b, peaks, weight))
    ref_b = _ref_loss(inp_b, target_b, peaks, weight)
    assert jnp.allclose(loss_b, ref_b, rtol=1e-4, atol=1e-5), (loss_b, ref_b)

    print("KERNEL_OK")
</pallas_src>

<mosaic_0001>
module attributes {stable_mosaic.version = 11 : i64} {
  func.func @_smooth_peak_loss_kernel(%arg0: i32, %arg1: memref<1xf32, #tpu.memory_space<smem>>, %arg2: memref<8x128xf32, #tpu.memory_space<vmem>>, %arg3: memref<8x128xf32, #tpu.memory_space<vmem>>, %arg4: memref<1x1xf32, #tpu.memory_space<vmem>>, %arg5: memref<1x1xf32, #tpu.memory_space<vmem>>) attributes {dimension_semantics = [#tpu.dimension_semantics<arbitrary>], iteration_bounds = array<i64: 1>, scalar_prefetch = 0 : i64, scratch_operands = 1 : i64, tpu.core_type = #tpu.core_type<tc>, window_params = [{transform_indices = @transform_0, window_bounds = array<i64: 1>}, {transform_indices = @transform_1, window_bounds = array<i64: 8, 128>}, {transform_indices = @transform_2, window_bounds = array<i64: 8, 128>}, {pipeline_mode = #tpu.pipeline_mode<synchronous>, transform_indices = @transform_3, window_bounds = array<i64: 1, 1>}]} {
    %c0_i32 = arith.constant 0 : i32
    %0 = arith.cmpi eq, %arg0, %c0_i32 : i32
    %1 = arith.extui %0 : i1 to i32
    %c0_i32_0 = arith.constant 0 : i32
    %2 = arith.cmpi ne, %1, %c0_i32_0 : i32
    scf.if %2 {
      %cst_13 = arith.constant 0.000000e+00 : f32
      %25 = vector.broadcast %cst_13 : f32 to vector<1x1xf32>
      %c0_14 = arith.constant 0 : index
      %c0_15 = arith.constant 0 : index
      %26 = vector.load %arg5[%c0_14, %c0_15] : memref<1x1xf32, #tpu.memory_space<vmem>>, vector<1x1xf32>
      tpu.vector_store %arg5[%c0_14, %c0_15], %25 {strides = array<i32>} : memref<1x1xf32, #tpu.memory_space<vmem>>, vector<1x1xf32>,
    } else {
    }
    %c0 = arith.constant 0 : index
    %c0_1 = arith.constant 0 : index
    %3 = vector.load %arg2[%c0, %c0_1] : memref<8x128xf32, #tpu.memory_space<vmem>>, vector<8x128xf32>
    %c0_2 = arith.constant 0 : index
    %c0_3 = arith.constant 0 : index
    %4 = vector.load %arg3[%c0_2, %c0_3] : memref<8x128xf32, #tpu.memory_space<vmem>>, vector<8x128xf32>
    %c0_4 = arith.constant 0 : index
    %5 = memref.load %arg1[%c0_4] : memref<1xf32, #tpu.memory_space<smem>>
    %6 = arith.subf %3, %4 : vector<8x128xf32>
    %7 = arith.mulf %6, %6 : vector<8x128xf32>
    %8 = vector.broadcast %5 : f32 to vector<8x128xf32>
    %9 = arith.cmpf oeq, %4, %8 : vector<8x128xf32>
    %cst = arith.constant 1.000000e+00 : f32
    %cst_5 = arith.constant 5.000000e-01 : f32
    %10 = vector.broadcast %cst : f32 to vector<8x128xf32>
    %11 = vector.broadcast %cst_5 : f32 to vector<8x128xf32>
    %12 = arith.select %9, %10, %11 : vector<8x128xi1>, vector<8x128xf32>
    %c0_6 = arith.constant 0 : index
    %c0_7 = arith.constant 0 : index
    %13 = vector.load %arg5[%c0_6, %c0_7] : memref<1x1xf32, #tpu.memory_space<vmem>>, vector<1x1xf32>
    %14 = arith.mulf %12, %7 : vector<8x128xf32>
    %15 = vector.shape_cast %14 : vector<8x128xf32> to vector<1x8x128xf32>
    %cst_8 = arith.constant dense<0.000000e+00> : vector<1xf32>
    %16 = vector.multi_reduction <add>, %15, %cst_8 [1, 2] : vector<1x8x128xf32> to vector<1xf32>
    %17 = vector.shape_cast %16 : vector<1xf32> to vector<1x1x1xf32>
    %18 = vector.extract %17[0, 0, 0] : f32 from vector<1x1x1xf32>
    %19 = vector.broadcast %18 : f32 to vector<1x1xf32>
    %20 = arith.addf %13, %19 : vector<1x1xf32>
    %c0_9 = arith.constant 0 : index
    %c0_10 = arith.constant 0 : index
    %21 = vector.load %arg5[%c0_9, %c0_10] : memref<1x1xf32, #tpu.memory_space<vmem>>, vector<1x1xf32>
    tpu.vector_store %arg5[%c0_9, %c0_10], %20 {strides = array<i32>} : memref<1x1xf32, #tpu.memory_space<vmem>>, vector<1x1xf32>,
    %c0_i32_11 = arith.constant 0 : i32
    %22 = arith.cmpi eq, %arg0, %c0_i32_11 : i32
    %23 = arith.extui %22 : i1 to i32
    %c0_i32_12 = arith.constant 0 : i32
    %24 = arith.cmpi ne, %23, %c0_i32_12 : i32
    scf.if %24 {
      %c0_13 = arith.constant 0 : index
      %c0_14 = arith.constant 0 : index
      %25 = vector.load %arg5[%c0_13, %c0_14] : memref<1x1xf32, #tpu.memory_space<vmem>>, vector<1x1xf32>
      %cst_15 = arith.constant 1.600000e+01 : f32
      %26 = vector.broadcast %cst_15 : f32 to vector<1x1xf32>
      %27 = arith.divf %25, %26 : vector<1x1xf32>
      %c0_16 = arith.constant 0 : index
      %c0_17 = arith.constant 0 : index
      %28 = vector.load %arg4[%c0_16, %c0_17] : memref<1x1xf32, #tpu.memory_space<vmem>>, vector<1x1xf32>
      tpu.vector_store %arg4[%c0_16, %c0_17], %27 {strides = array<i32>} : memref<1x1xf32, #tpu.memory_space<vmem>>, vector<1x1xf32>,
    } else {
    }
    return
  }
  func.func @transform_0(%arg0: i32) -> i32 {
    %c0_i32 = arith.constant 0 : i32
    %c0_i32_0 = arith.constant 0 : i32
    return %c0_i32 : i32
  }
  func.func @transform_1(%arg0: i32) -> (i32, i32) {
    %c0_i32 = arith.constant 0 : i32
    %c0_i32_0 = arith.constant 0 : i32
    return %arg0, %c0_i32 : i32, i32
  }
  func.func @transform_2(%arg0: i32) -> (i32, i32) {
    %c0_i32 = arith.constant 0 : i32
    %c0_i32_0 = arith.constant 0 : i32
    return %arg0, %c0_i32 : i32, i32
  }
  func.func @transform_3(%arg0: i32) -> (i32, i32) {
    %c0_i32 = arith.constant 0 : i32
    %c0_i32_0 = arith.constant 0 : i32
    %c0_i32_1 = arith.constant 0 : i32
    return %c0_i32, %c0_i32_0 : i32, i32
  }
}

</mosaic_0001>

<llo_original>
// kernel: tpu_custom_call.1
$region0: #{tpu_custom_call.1}
  #allocation0 [shape = 'u32[]', space=smem, size = 0x4, offset = 0x4, fixed_abs, tag = 'smem constant byte address 0x4 - core index']
  #allocation1 [shape = 'u32[144,128]{1,0:T(1,128)}', space=vmem, size = 0x12000, scoped, tag = 'internal scratch']
  #allocation2 [shape = 'f32[1,1]{1,0:T(1,128)}', space=vmem, size = 0x200, scoped, tag = 'scratch operand']
  #allocation3 [shape = 'f32[1]{0:T(128)S(6)}', space=smem, size = 0x200, scoped, tag = 'scoped memory for tpu_custom_call.1']
  %s0 = inlined_call_operand.<no memory space> [shape: f32[1], index: 0, kind: input, shape index: {}]
  %s1 = inlined_call_operand.hbm [shape: f32[8,128], index: 1, kind: input, shape index: {}]
  %s2 = inlined_call_operand.hbm [shape: f32[8,128], index: 2, kind: input, shape index: {}]
  %s3 = inlined_call_operand.hbm [shape: f32[1,1], index: 3, kind: output, shape index: {}]
  %s4 = sld [smem:[#allocation0]]
  $region38: #{tpu_custom_call.1} parent=0
    _
  %s6 = ssub.s32 1, %s4
  %s7 = scalar_select 0, %s6, %s4
  %8 = sst [smem:[#allocation3]] %s0
  $region1: #{tpu_custom_call.1} parent=0
    #allocation4 [shape = 'u8[4096]{0}', space=vmem, size = 0x1000, scoped, tag = 'input window, operand 1, single buffered']
    #allocation5 [shape = 's32[1]{0}', space=sflag, size = 0x4, scoped, tag = 'scoped memory for tpu_custom_call.1']
    #allocation6 [shape = 's32[1]{0}', space=sflag, size = 0x4, scoped, tag = 'scoped memory for tpu_custom_call.1']
    #allocation7 [shape = 'u8[4096]{0}', space=vmem, size = 0x1000, scoped, tag = 'input window, operand 2, single buffered']
    #allocation8 [shape = 's32[1]{0}', space=sflag, size = 0x4, scoped, tag = 'scoped memory for tpu_custom_call.1']
    #allocation9 [shape = 'u8[512]{0}', space=vmem, size = 0x400, scoped, tag = 'output window, operand 0, single buffered']
    %9 = vsyncpa [#allocation5], 0
    %10 = vsyncpa [#allocation8], 0
    %11 = vsyncpa [#allocation6], 0
    // Predicated region
    $region2: #{tpu_custom_call.1} parent=1 // pred_check
      _
    $region3: #{tpu_custom_call.1} parent=1 // pred_check_branch
      %13 = sbr.rel (0) target = $region5
    $region4: #{tpu_custom_call.1} parent=1 // pred_region
      _
    $region5: #{tpu_custom_call.1} parent=1 // pred_fallthru
      _
    // Predicated region
    $region6: #{tpu_custom_call.1} parent=1 // pred_check
      _
    $region7: #{tpu_custom_call.1} parent=1 // pred_check_branch
      %15 = sbr.rel (0) target = $region9
    $region8: #{tpu_custom_call.1} parent=1 // pred_region
      %s17 = ssub.s32 128, 128
      %18 = vsyncadd [#allocation5], %s17
      %s20 = sshll.u32 [#allocation4], 4
      %s21 = int_to_ptr.vmem [resolvable:$true] %s20
      %23 = dma.hbm_to_vmem [thread:$0]  %s1, 128, %s21, [#allocation5]
    $region9: #{tpu_custom_call.1} parent=1 // pred_fallthru
      _
    // Predicated region
    $region10: #{tpu_custom_call.1} parent=1 // pred_check
      _
    $region11: #{tpu_custom_call.1} parent=1 // pred_check_branch
      %25 = sbr.rel (0) target = $region13
    $region12: #{tpu_custom_call.1} parent=1 // pred_region
      %s27 = ssub.s32 128, 128
      %28 = vsyncadd [#allocation8], %s27
      %s30 = sshll.u32 [#allocation7], 4
      %s31 = int_to_ptr.vmem [resolvable:$true] %s30
      %33 = dma.hbm_to_vmem [thread:$0]  %s2, 128, %s31, [#allocation8]
    $region13: #{tpu_custom_call.1} parent=1 // pred_fallthru
      _
    // Predicated region
    $region14: #{tpu_custom_call.1} parent=1 // pred_check
      _
    $region15: #{tpu_custom_call.1} parent=1 // pred_check_branch
      %35 = sbr.rel (0) target = $region17
    $region16: #{tpu_custom_call.1} parent=1 // pred_region
      %36 = dma.done [#allocation5], 128
    $region17: #{tpu_custom_call.1} parent=1 // pred_fallthru
      _
    // Predicated region
    $region18: #{tpu_custom_call.1} parent=1 // pred_check
      _
    $region19: #{tpu_custom_call.1} parent=1 // pred_check_branch
      %38 = sbr.rel (0) target = $region21
    $region20: #{tpu_custom_call.1} parent=1 // pred_region
      %39 = dma.done [#allocation8], 128
    $region21: #{tpu_custom_call.1} parent=1 // pred_fallthru
      _
    %p40 = scmp.eq.s32.totalorder 0, 0
    // Predicated region
    $region22: #{tpu_custom_call.1} parent=1 // pred_check
      %p41 = pneg %p40
    $region23: #{tpu_custom_call.1} parent=1 // pred_check_branch
      %43 = sbr.rel (%p41) target = $region25
    $region24: #{tpu_custom_call.1} parent=1 // pred_region
      %vm44 = vcmask 0
      %45 = vst.msk [vmem:[#allocation2] sm:$0x1] %vm44, 0.0
    $region25: #{tpu_custom_call.1} parent=1 // pred_fallthru
      _
    %v46 = vld [vmem:[#allocation4] sm:$0xff]
    %v47 = vld [vmem:[#allocation7] sm:$0xff]
    %s48 = sld [smem:[#allocation3]]
    %v49 = vsub.f32 %v46, %v47
    %v50 = vmul.f32 %v49, %v49
    %v51 = vstv %s48
    %vm52 = vcmp.eq.f32.partialorder %v47, %v51
    %v53 = vsel %vm52, 1.0, 0.5
    %v54 = vld [vmem:[#allocation2] sm:$0x1]
    %v55 = vmul.f32 %v53, %v50
    %56 = vadd.xlane.f32.xlu0 %v55
    %v57 = vpop.xlane.xlu0 %56
    %v58 = vrot.slane %v57, 4
    %v59 = vadd.f32 %v57, %v58
    %v60 = vrot.slane %v59, 2
    %v61 = vadd.f32 %v59, %v60
    %v62 = vrot.slane %v61, 1
    %v63 = vadd.f32 %v61, %v62
    %s64 = vtos %v63
    %v65 = vstv %s64
    %v66 = vadd.f32 %v54, %v65
    %vm67 = vcmask 0
    %68 = vst.msk [vmem:[#allocation2] sm:$0x1] %vm67, %v66
    // Predicated region
    $region26: #{tpu_custom_call.1} parent=1 // pred_check
      %p69 = pneg %p40
    $region27: #{tpu_custom_call.1} parent=1 // pred_check_branch
      %71 = sbr.rel (%p69) target = $region29
    $region28: #{tpu_custom_call.1} parent=1 // pred_region
      %v72 = vld [vmem:[#allocation2] sm:$0x1]
      %v73 = vrcp.pop 16.0
      %v74 = vmul.f32 %v72, %v73
      %75 = vst.msk [vmem:[#allocation9] sm:$0x1] %vm67, %v74
    $region29: #{tpu_custom_call.1} parent=1 // pred_fallthru
      _
    // Predicated region
    $region30: #{tpu_custom_call.1} parent=1 // pred_check
      _
    $region31: #{tpu_custom_call.1} parent=1 // pred_check_branch
      %77 = sbr.rel (0) target = $region33
    $region32: #{tpu_custom_call.1} parent=1 // pred_region
      %s79 = ssub.s32 16, 16
      %80 = vsyncadd [#allocation6], %s79
      %s82 = sshll.u32 [#allocation9], 4
      %s83 = int_to_ptr.vmem [resolvable:$true] %s82
      %85 = dma.vmem_to_hbm [thread:$0]  %s83, 16, %s3, [#allocation6]
    $region33: #{tpu_custom_call.1} parent=1 // pred_fallthru
      _
    // Predicated region
    $region34: #{tpu_custom_call.1} parent=1 // pred_check
      _
    $region35: #{tpu_custom_call.1} parent=1 // pred_check_branch
      %87 = sbr.rel (0) target = $region37
    $region36: #{tpu_custom_call.1} parent=1 // pred_region
      %88 = dma.done [#allocation6], 16
    $region37: #{tpu_custom_call.1} parent=1 // pred_fallthru
      _
    %89 = vsyncpa [#allocation5], 1
    %90 = vsyncpa [#allocation8], 1
    %91 = vsyncpa [#allocation6], 1

</llo_original>
